<compile_context>
chip_gen: v7x
topology: tpu7x:2x2x1
jax: 0.10.0
libtpu: 0.0.40
codegen_flags: <defaults>
</compile_context>

<pallas_src>
import functools

import jax
import jax.numpy as jnp
from jax.experimental import pallas as pl
from jax.experimental.pallas import tpu as pltpu

KERNEL_H = 7
PAD_H = 3


def cbam_kernel(w_ref, x_ref, o_ref, *, width):
    # w_ref: SMEM (2, 7) f32 -- conv1 weight (out=1, in=2, kh=7, kw=1) flattened.
    # x_ref / o_ref: VMEM (1, C, H*W) -- lane-dense flattened spatial axis.
    x = x_ref[0]                                   # (C, HW), native dtype
    c, hw = x.shape

    # Channel reductions: f32 accumulation for the mean, max in native dtype.
    avg = jnp.sum(x, axis=0, keepdims=True, dtype=jnp.float32) * (1.0 / c)   # (1, HW)
    mx = jnp.max(x, axis=0, keepdims=True).astype(jnp.float32)               # (1, HW)

    # (7, 1) height-only conv on the flat layout: a shift of d rows is a shift
    # of d*width along the flat lane axis.  Pre-combine the two input planes
    # with this tap's weights (VPU), then do ONE pltpu.roll per tap (XLU) and
    # mask out rows that fell off the top/bottom (replaces the zero pad).
    pos = jax.lax.broadcasted_iota(jnp.int32, (1, hw), 1)

    # Center tap (d == 0): no roll, no mask.
    acc = w_ref[0, PAD_H] * avg + w_ref[1, PAD_H] * mx
    for k in range(KERNEL_H):
        d = k - PAD_H                              # row offset of this tap
        if d == 0:
            continue
        plane = w_ref[0, k] * avg + w_ref[1, k] * mx          # (1, HW) f32
        shifted = pltpu.roll(plane, shift=(-d * width) % hw, axis=1)
        src = pos + d * width
        valid = jnp.logical_and(src >= 0, src < hw)
        acc = acc + jnp.where(valid, shifted, 0.0)

    att = jax.nn.sigmoid(acc)                      # (1, HW) spatial attention map
    # Broadcast multiply in the input's native dtype; lane-dense store.
    o_ref[0] = x * att.astype(x.dtype)


def cbam_forward(x, conv_weight):
    """x: (N, C, H, W); conv_weight: (1, 2, 7, 1) like nn.Conv2d(2,1,(7,1),padding=(3,0),bias=False)."""
    N, C, H, W = x.shape
    HW = H * W
    w2d = conv_weight.reshape(2, KERNEL_H).astype(jnp.float32)
    x_flat = x.reshape(N, C, HW)                   # lane-dense: last dim is H*W

    # Per-grid-step footprint: double-buffered input + output slab plus small
    # f32 (1, HW) temporaries.  Cap the scoped VMEM request at 64 MiB so the
    # same configuration is valid on v7x (64 MiB physical VMEM).
    # TODO(synk): for slabs that exceed VMEM, switch to a C-chunked two-pass
    # variant (pass 1: accumulate sum / running max; pass 2: reload + multiply).
    slab_bytes = C * HW * jnp.dtype(x.dtype).itemsize
    vmem_limit = int(min(64 << 20, max(16 << 20, 8 * slab_bytes)))

    out_flat = pl.pallas_call(
        functools.partial(cbam_kernel, width=W),
        out_shape=jax.ShapeDtypeStruct((N, C, HW), x.dtype),
        grid_spec=pltpu.PrefetchScalarGridSpec(
            num_scalar_prefetch=0,
            grid=(N,),
            in_specs=[
                pl.BlockSpec(memory_space=pltpu.MemorySpace.SMEM),   # conv weights
                pl.BlockSpec((1, C, HW), lambda n: (n, 0, 0)),       # x slab per batch
            ],
            out_specs=pl.BlockSpec((1, C, HW), lambda n: (n, 0, 0)),
        ),
        compiler_params=pltpu.CompilerParams(
            dimension_semantics=("parallel",),
            vmem_limit_bytes=vmem_limit,
        ),
    )(w2d, x_flat)
    return out_flat.reshape(N, C, H, W)


def cbam_reference(x, conv_weight):
    """Pure-JAX reference of the PyTorch forward pass (NCHW)."""
    xf = x.astype(jnp.float32)
    avg = jnp.mean(xf, axis=1, keepdims=True)                 # (N,1,H,W)
    mx = jnp.max(xf, axis=1, keepdims=True)                   # (N,1,H,W)
    cat = jnp.concatenate([avg, mx], axis=1)                  # (N,2,H,W)
    y = jax.lax.conv_general_dilated(
        cat, conv_weight.astype(jnp.float32),
        window_strides=(1, 1), padding=((PAD_H, PAD_H), (0, 0)),
        dimension_numbers=("NCHW", "OIHW", "NCHW"))           # (N,1,H,W)
    att = jax.nn.sigmoid(y)
    return (att * xf).astype(x.dtype)


if __name__ == "__main__":
    key = jax.random.PRNGKey(0)
    k_x, k_w = jax.random.split(key)

    N, C, H, W = 2, 4, 16, 16
    x = jax.random.normal(k_x, (N, C, H, W), dtype=jnp.float32)

    # Deterministic init mimicking nn.Conv2d default: U(-b, b), b = 1/sqrt(fan_in), fan_in = 2*7*1
    fan_in = 2 * KERNEL_H * 1
    bound = 1.0 / (fan_in ** 0.5)
    conv_weight = jax.random.uniform(
        k_w, (1, 2, KERNEL_H, 1), minval=-bound, maxval=bound, dtype=jnp.float32)

    out = cbam_forward(x, conv_weight)
    out = jax.block_until_ready(out)

    ref = cbam_reference(x, conv_weight)
    assert out.shape == (N, C, H, W)
    assert jnp.allclose(out, ref, atol=1e-5, rtol=1e-5), "mismatch vs pure-JAX reference"

    print("KERNEL_OK")
</pallas_src>

<mosaic_0001>
module attributes {stable_mosaic.version = 11 : i64} {
  func.func @cbam_kernel(%arg0: i32, %arg1: memref<2x7xf32, #tpu.memory_space<smem>>, %arg2: memref<1x4x256xf32, #tpu.memory_space<vmem>>, %arg3: memref<1x4x256xf32, #tpu.memory_space<vmem>>) attributes {dimension_semantics = [#tpu.dimension_semantics<parallel>], iteration_bounds = array<i64: 2>, scalar_prefetch = 0 : i64, scratch_operands = 0 : i64, tpu.core_type = #tpu.core_type<tc>, window_params = [{transform_indices = @transform_0, window_bounds = array<i64: 2, 7>}, {transform_indices = @transform_1, window_bounds = array<i64: 1, 4, 256>}, {transform_indices = @transform_2, window_bounds = array<i64: 1, 4, 256>}]} {
    %c0 = arith.constant 0 : index
    %c0_0 = arith.constant 0 : index
    %c0_1 = arith.constant 0 : index
    %0 = vector.load %arg2[%c0, %c0_0, %c0_1] : memref<1x4x256xf32, #tpu.memory_space<vmem>>, vector<1x4x256xf32>
    %1 = vector.shape_cast %0 : vector<1x4x256xf32> to vector<4x256xf32>
    %cst = arith.constant dense<0.000000e+00> : vector<256xf32>
    %2 = vector.multi_reduction <add>, %1, %cst [0] : vector<4x256xf32> to vector<256xf32>
    %3 = vector.shape_cast %2 : vector<256xf32> to vector<1x256xf32>
    %cst_2 = arith.constant 2.500000e-01 : f32
    %4 = vector.broadcast %cst_2 : f32 to vector<1x256xf32>
    %5 = arith.mulf %3, %4 : vector<1x256xf32>
    %cst_3 = arith.constant dense<0xFF800000> : vector<256xf32>
    %6 = vector.multi_reduction <maximumf>, %1, %cst_3 [0] : vector<4x256xf32> to vector<256xf32>
    %7 = vector.shape_cast %6 : vector<256xf32> to vector<1x256xf32>
    %8 = tpu.iota {dimensions = array<i32: 1>} : vector<1x256xi32>
    %c0_4 = arith.constant 0 : index
    %c3 = arith.constant 3 : index
    %9 = memref.load %arg1[%c0_4, %c3] : memref<2x7xf32, #tpu.memory_space<smem>>
    %10 = vector.broadcast %9 : f32 to vector<1x256xf32>
    %11 = arith.mulf %10, %5 : vector<1x256xf32>
    %c1 = arith.constant 1 : index
    %c3_5 = arith.constant 3 : index
    %12 = memref.load %arg1[%c1, %c3_5] : memref<2x7xf32, #tpu.memory_space<smem>>
    %13 = vector.broadcast %12 : f32 to vector<1x256xf32>
    %14 = arith.mulf %13, %7 : vector<1x256xf32>
    %15 = arith.addf %11, %14 : vector<1x256xf32>
    %c0_6 = arith.constant 0 : index
    %c0_7 = arith.constant 0 : index
    %16 = memref.load %arg1[%c0_6, %c0_7] : memref<2x7xf32, #tpu.memory_space<smem>>
    %17 = vector.broadcast %16 : f32 to vector<1x256xf32>
    %18 = arith.mulf %17, %5 : vector<1x256xf32>
    %c1_8 = arith.constant 1 : index
    %c0_9 = arith.constant 0 : index
    %19 = memref.load %arg1[%c1_8, %c0_9] : memref<2x7xf32, #tpu.memory_space<smem>>
    %20 = vector.broadcast %19 : f32 to vector<1x256xf32>
    %21 = arith.mulf %20, %7 : vector<1x256xf32>
    %22 = arith.addf %18, %21 : vector<1x256xf32>
    %c48_i32 = arith.constant 48 : i32
    %23 = tpu.dynamic_rotate %22 by %c48_i32 dim 1 : vector<1x256xf32>, i32 -> vector<1x256xf32>
    %c-48_i32 = arith.constant -48 : i32
    %24 = vector.broadcast %c-48_i32 : i32 to vector<1x256xi32>
    %25 = arith.addi %8, %24 : vector<1x256xi32>
    %c0_i32 = arith.constant 0 : i32
    %26 = vector.broadcast %c0_i32 : i32 to vector<1x256xi32>
    %27 = arith.cmpi sge, %25, %26 : vector<1x256xi32>
    %c256_i32 = arith.constant 256 : i32
    %28 = vector.broadcast %c256_i32 : i32 to vector<1x256xi32>
    %29 = arith.cmpi slt, %25, %28 : vector<1x256xi32>
    %30 = arith.andi %27, %29 : vector<1x256xi1>
    %cst_10 = arith.constant 0.000000e+00 : f32
    %31 = vector.broadcast %cst_10 : f32 to vector<1x256xf32>
    %32 = arith.select %30, %23, %31 : vector<1x256xi1>, vector<1x256xf32>
    %33 = arith.addf %15, %32 : vector<1x256xf32>
    %c0_11 = arith.constant 0 : index
    %c1_12 = arith.constant 1 : index
    %34 = memref.load %arg1[%c0_11, %c1_12] : memref<2x7xf32, #tpu.memory_space<smem>>
    %35 = vector.broadcast %34 : f32 to vector<1x256xf32>
    %36 = arith.mulf %35, %5 : vector<1x256xf32>
    %c1_13 = arith.constant 1 : index
    %c1_14 = arith.constant 1 : index
    %37 = memref.load %arg1[%c1_13, %c1_14] : memref<2x7xf32, #tpu.memory_space<smem>>
    %38 = vector.broadcast %37 : f32 to vector<1x256xf32>
    %39 = arith.mulf %38, %7 : vector<1x256xf32>
    %40 = arith.addf %36, %39 : vector<1x256xf32>
    %c32_i32 = arith.constant 32 : i32
    %41 = tpu.dynamic_rotate %40 by %c32_i32 dim 1 : vector<1x256xf32>, i32 -> vector<1x256xf32>
    %c-32_i32 = arith.constant -32 : i32
    %42 = vector.broadcast %c-32_i32 : i32 to vector<1x256xi32>
    %43 = arith.addi %8, %42 : vector<1x256xi32>
    %c0_i32_15 = arith.constant 0 : i32
    %44 = vector.broadcast %c0_i32_15 : i32 to vector<1x256xi32>
    %45 = arith.cmpi sge, %43, %44 : vector<1x256xi32>
    %c256_i32_16 = arith.constant 256 : i32
    %46 = vector.broadcast %c256_i32_16 : i32 to vector<1x256xi32>
    %47 = arith.cmpi slt, %43, %46 : vector<1x256xi32>
    %48 = arith.andi %45, %47 : vector<1x256xi1>
    %cst_17 = arith.constant 0.000000e+00 : f32
    %49 = vector.broadcast %cst_17 : f32 to vector<1x256xf32>
    %50 = arith.select %48, %41, %49 : vector<1x256xi1>, vector<1x256xf32>
    %51 = arith.addf %33, %50 : vector<1x256xf32>
    %c0_18 = arith.constant 0 : index
    %c2 = arith.constant 2 : index
    %52 = memref.load %arg1[%c0_18, %c2] : memref<2x7xf32, #tpu.memory_space<smem>>
    %53 = vector.broadcast %52 : f32 to vector<1x256xf32>
    %54 = arith.mulf %53, %5 : vector<1x256xf32>
    %c1_19 = arith.constant 1 : index
    %c2_20 = arith.constant 2 : index
    %55 = memref.load %arg1[%c1_19, %c2_20] : memref<2x7xf32, #tpu.memory_space<smem>>
    %56 = vector.broadcast %55 : f32 to vector<1x256xf32>
    %57 = arith.mulf %56, %7 : vector<1x256xf32>
    %58 = arith.addf %54, %57 : vector<1x256xf32>
    %c16_i32 = arith.constant 16 : i32
    %59 = tpu.dynamic_rotate %58 by %c16_i32 dim 1 : vector<1x256xf32>, i32 -> vector<1x256xf32>
    %c-16_i32 = arith.constant -16 : i32
    %60 = vector.broadcast %c-16_i32 : i32 to vector<1x256xi32>
    %61 = arith.addi %8, %60 : vector<1x256xi32>
    %c0_i32_21 = arith.constant 0 : i32
    %62 = vector.broadcast %c0_i32_21 : i32 to vector<1x256xi32>
    %63 = arith.cmpi sge, %61, %62 : vector<1x256xi32>
    %c256_i32_22 = arith.constant 256 : i32
    %64 = vector.broadcast %c256_i32_22 : i32 to vector<1x256xi32>
    %65 = arith.cmpi slt, %61, %64 : vector<1x256xi32>
    %66 = arith.andi %63, %65 : vector<1x256xi1>
    %cst_23 = arith.constant 0.000000e+00 : f32
    %67 = vector.broadcast %cst_23 : f32 to vector<1x256xf32>
    %68 = arith.select %66, %59, %67 : vector<1x256xi1>, vector<1x256xf32>
    %69 = arith.addf %51, %68 : vector<1x256xf32>
    %c0_24 = arith.constant 0 : index
    %c4 = arith.constant 4 : index
    %70 = memref.load %arg1[%c0_24, %c4] : memref<2x7xf32, #tpu.memory_space<smem>>
    %71 = vector.broadcast %70 : f32 to vector<1x256xf32>
    %72 = arith.mulf %71, %5 : vector<1x256xf32>
    %c1_25 = arith.constant 1 : index
    %c4_26 = arith.constant 4 : index
    %73 = memref.load %arg1[%c1_25, %c4_26] : memref<2x7xf32, #tpu.memory_space<smem>>
    %74 = vector.broadcast %73 : f32 to vector<1x256xf32>
    %75 = arith.mulf %74, %7 : vector<1x256xf32>
    %76 = arith.addf %72, %75 : vector<1x256xf32>
    %c240_i32 = arith.constant 240 : i32
    %77 = tpu.dynamic_rotate %76 by %c240_i32 dim 1 : vector<1x256xf32>, i32 -> vector<1x256xf32>
    %c16_i32_27 = arith.constant 16 : i32
    %78 = vector.broadcast %c16_i32_27 : i32 to vector<1x256xi32>
    %79 = arith.addi %8, %78 : vector<1x256xi32>
    %c0_i32_28 = arith.constant 0 : i32
    %80 = vector.broadcast %c0_i32_28 : i32 to vector<1x256xi32>
    %81 = arith.cmpi sge, %79, %80 : vector<1x256xi32>
    %c256_i32_29 = arith.constant 256 : i32
    %82 = vector.broadcast %c256_i32_29 : i32 to vector<1x256xi32>
    %83 = arith.cmpi slt, %79, %82 : vector<1x256xi32>
    %84 = arith.andi %81, %83 : vector<1x256xi1>
    %cst_30 = arith.constant 0.000000e+00 : f32
    %85 = vector.broadcast %cst_30 : f32 to vector<1x256xf32>
    %86 = arith.select %84, %77, %85 : vector<1x256xi1>, vector<1x256xf32>
    %87 = arith.addf %69, %86 : vector<1x256xf32>
    %c0_31 = arith.constant 0 : index
    %c5 = arith.constant 5 : index
    %88 = memref.load %arg1[%c0_31, %c5] : memref<2x7xf32, #tpu.memory_space<smem>>
    %89 = vector.broadcast %88 : f32 to vector<1x256xf32>
    %90 = arith.mulf %89, %5 : vector<1x256xf32>
    %c1_32 = arith.constant 1 : index
    %c5_33 = arith.constant 5 : index
    %91 = memref.load %arg1[%c1_32, %c5_33] : memref<2x7xf32, #tpu.memory_space<smem>>
    %92 = vector.broadcast %91 : f32 to vector<1x256xf32>
    %93 = arith.mulf %92, %7 : vector<1x256xf32>
    %94 = arith.addf %90, %93 : vector<1x256xf32>
    %c224_i32 = arith.constant 224 : i32
    %95 = tpu.dynamic_rotate %94 by %c224_i32 dim 1 : vector<1x256xf32>, i32 -> vector<1x256xf32>
    %c32_i32_34 = arith.constant 32 : i32
    %96 = vector.broadcast %c32_i32_34 : i32 to vector<1x256xi32>
    %97 = arith.addi %8, %96 : vector<1x256xi32>
    %c0_i32_35 = arith.constant 0 : i32
    %98 = vector.broadcast %c0_i32_35 : i32 to vector<1x256xi32>
    %99 = arith.cmpi sge, %97, %98 : vector<1x256xi32>
    %c256_i32_36 = arith.constant 256 : i32
    %100 = vector.broadcast %c256_i32_36 : i32 to vector<1x256xi32>
    %101 = arith.cmpi slt, %97, %100 : vector<1x256xi32>
    %102 = arith.andi %99, %101 : vector<1x256xi1>
    %cst_37 = arith.constant 0.000000e+00 : f32
    %103 = vector.broadcast %cst_37 : f32 to vector<1x256xf32>
    %104 = arith.select %102, %95, %103 : vector<1x256xi1>, vector<1x256xf32>
    %105 = arith.addf %87, %104 : vector<1x256xf32>
    %c0_38 = arith.constant 0 : index
    %c6 = arith.constant 6 : index
    %106 = memref.load %arg1[%c0_38, %c6] : memref<2x7xf32, #tpu.memory_space<smem>>
    %107 = vector.broadcast %106 : f32 to vector<1x256xf32>
    %108 = arith.mulf %107, %5 : vector<1x256xf32>
    %c1_39 = arith.constant 1 : index
    %c6_40 = arith.constant 6 : index
    %109 = memref.load %arg1[%c1_39, %c6_40] : memref<2x7xf32, #tpu.memory_space<smem>>
    %110 = vector.broadcast %109 : f32 to vector<1x256xf32>
    %111 = arith.mulf %110, %7 : vector<1x256xf32>
    %112 = arith.addf %108, %111 : vector<1x256xf32>
    %c208_i32 = arith.constant 208 : i32
    %113 = tpu.dynamic_rotate %112 by %c208_i32 dim 1 : vector<1x256xf32>, i32 -> vector<1x256xf32>
    %c48_i32_41 = arith.constant 48 : i32
    %114 = vector.broadcast %c48_i32_41 : i32 to vector<1x256xi32>
    %115 = arith.addi %8, %114 : vector<1x256xi32>
    %c0_i32_42 = arith.constant 0 : i32
    %116 = vector.broadcast %c0_i32_42 : i32 to vector<1x256xi32>
    %117 = arith.cmpi sge, %115, %116 : vector<1x256xi32>
    %c256_i32_43 = arith.constant 256 : i32
    %118 = vector.broadcast %c256_i32_43 : i32 to vector<1x256xi32>
    %119 = arith.cmpi slt, %115, %118 : vector<1x256xi32>
    %120 = arith.andi %117, %119 : vector<1x256xi1>
    %cst_44 = arith.constant 0.000000e+00 : f32
    %121 = vector.broadcast %cst_44 : f32 to vector<1x256xf32>
    %122 = arith.select %120, %113, %121 : vector<1x256xi1>, vector<1x256xf32>
    %123 = arith.addf %105, %122 : vector<1x256xf32>
    %124 = arith.negf %123 : vector<1x256xf32>
    %125 = math.exp %124 : vector<1x256xf32>
    %cst_45 = arith.constant 1.000000e+00 : f32
    %126 = vector.broadcast %cst_45 : f32 to vector<1x256xf32>
    %127 = arith.addf %126, %125 : vector<1x256xf32>
    %128 = arith.divf %126, %127 : vector<1x256xf32>
    %129 = vector.broadcast %128 : vector<1x256xf32> to vector<4x256xf32>
    %130 = arith.mulf %1, %129 : vector<4x256xf32>
    %c0_46 = arith.constant 0 : index
    %c0_47 = arith.constant 0 : index
    %c0_48 = arith.constant 0 : index
    %131 = vector.load %arg3[%c0_46, %c0_47, %c0_48] : memref<1x4x256xf32, #tpu.memory_space<vmem>>, vector<1x4x256xf32>
    %132 = vector.shape_cast %131 : vector<1x4x256xf32> to vector<4x256xf32>
    %133 = vector.shape_cast %130 : vector<4x256xf32> to vector<1x4x256xf32>
    tpu.vector_store %arg3[%c0_46, %c0_47, %c0_48], %133 {strides = array<i32>} : memref<1x4x256xf32, #tpu.memory_space<vmem>>, vector<1x4x256xf32>,
    return
  }
  func.func @transform_0(%arg0: i32) -> (i32, i32) {
    %c0_i32 = arith.constant 0 : i32
    %c0_i32_0 = arith.constant 0 : i32
    %c0_i32_1 = arith.constant 0 : i32
    return %c0_i32, %c0_i32_0 : i32, i32
  }
  func.func @transform_1(%arg0: i32) -> (i32, i32, i32) {
    %c0_i32 = arith.constant 0 : i32
    %c0_i32_0 = arith.constant 0 : i32
    %c0_i32_1 = arith.constant 0 : i32
    return %arg0, %c0_i32, %c0_i32_0 : i32, i32, i32
  }
  func.func @transform_2(%arg0: i32) -> (i32, i32, i32) {
    %c0_i32 = arith.constant 0 : i32
    %c0_i32_0 = arith.constant 0 : i32
    %c0_i32_1 = arith.constant 0 : i32
    return %arg0, %c0_i32, %c0_i32_0 : i32, i32, i32
  }
}

</mosaic_0001>

<llo_original>
// kernel: tpu_custom_call.1
$region0: #{tpu_custom_call.1}
  #allocation0 [shape = 'u32[]', space=smem, size = 0x4, offset = 0x4, fixed_abs, tag = 'smem constant byte address 0x4 - core index']
  #allocation1 [shape = 'u32[144,128]{1,0:T(1,128)}', space=vmem, size = 0x12000, scoped, tag = 'internal scratch']
  %s0 = inlined_call_operand.hbm [shape: f32[2,7], index: 0, kind: input, shape index: {}]
  %s1 = inlined_call_operand.hbm [shape: f32[2,4,256], index: 1, kind: input, shape index: {}]
  %s2 = inlined_call_operand.hbm [shape: f32[2,4,256], index: 2, kind: output, shape index: {}]
  %s3 = sld [smem:[#allocation0]]
  $region49: #{tpu_custom_call.1} parent=0
    _
  %s5 = ssub.s32 1, %s3
  %s6 = scalar_select 0, %s5, %s3
  $region1: #{tpu_custom_call.1} parent=0
    #allocation2 [shape = 'u8[1024]{0}', space=smem, size = 0x400, scoped, tag = 'input window, operand 0, single buffered']
    #allocation3 [shape = 's32[2]{0}', space=sflag, size = 0x8, scoped, tag = 'scoped memory for tpu_custom_call.1']
    #allocation4 [shape = 's32[2]{0}', space=sflag, size = 0x8, scoped, tag = 'scoped memory for tpu_custom_call.1']
    #allocation5 [shape = 's32[2]{0}', space=sflag, size = 0x8, scoped, tag = 'scoped memory for tpu_custom_call.1']
    #allocation6 [shape = 'u8[8192]{0}', space=vmem, size = 0x2000, scoped, tag = 'input window, operand 1']
    #allocation7 [shape = 'u8[8192]{0}', space=vmem, size = 0x2000, scoped, tag = 'output window, operand 0']
    %7 = vsyncpa [#allocation5], 0
    %8 = vsyncpa [#allocation3], 0
    %s9 = scalar_lea.sflag [#allocation3], 1
    %10 = vsyncpa %s9, 0
    %11 = vsyncpa [#allocation4], 0
    %s12 = scalar_lea.sflag [#allocation4], 1
    %13 = vsyncpa %s12, 0
    loop: start=0, step=1, limit=4
    $region2: #{tpu_custom_call.1} parent=1 // loop_pre_header
      _
    $region3: #{tpu_custom_call.1} parent=1 // loop_header
      %s15 = sphi 0, %s19
      %p16 = scmp.ge.s32.totalorder %s15, 4
      %s23 = sphi 0, %s23
      %s25 = sphi 0, %s23
      %s26 = sphi 0, %s25
      %s40 = sphi 0, %s26
      %s46 = sphi 0, %s48
      %s49 = sphi 0, %s46
      %s50 = sphi 0, %s49
      %s66 = sphi 0, %s50
      %s72 = sphi 0, %s74
      %s75 = sphi 0, %s72
      %s76 = sphi 0, %s75
      %s92 = sphi 0, %s76
    $region4: #{tpu_custom_call.1} parent=1 // loop_header_branch
      %18 = sbr.rel (%p16) target = $region8
    $region5: #{tpu_custom_call.1} parent=1 // loop_body
      %s20 = ssub.s32 %s15, 1
      %s21 = ssub.s32 %s15, 2
      %s22 = sadd.s32 %s15, 1
      %s24 = sadd.s32 %s23, 1
      %p27 = scmp.eq.s32.totalorder %s15, 1
      %p28 = scmp.ne.s32.totalorder %s23, %s25
      %p29 = scmp.eq.s32.totalorder %s15, 0
      %p30 = por %p28, %p29
      %p31 = scmp.ne.s32.totalorder %s23, %s25
      %p32 = scmp.eq.s32.totalorder %s20, 1
      %p33 = por %p31, %p32
      %p34 = scmp.ne.s32.totalorder %s25, %s26
      %p35 = scmp.eq.s32.totalorder %s20, 0
      %p36 = por %p34, %p35
      %p37 = scmp.ne.s32.totalorder %s25, %s26
      %p38 = scmp.eq.s32.totalorder %s21, 1
      %p39 = por %p37, %p38
      %p41 = scmp.ne.s32.totalorder %s26, %s40
      %p42 = scmp.eq.s32.totalorder %s21, 0
      %p43 = por %p41, %p42
      %s44 = ssub.s32 %s15, %s22
      %p45 = scmp.eq.s32.totalorder %s44, 0
      %s47 = sadd.s32 %s46, 1
      %s48 = scalar_select %p45, %s46, %s47
      %p51 = pneg %p45
      %p52 = scmp.eq.s32.totalorder %s15, 1
      %p53 = por %p51, %p52
      %p54 = scmp.ne.s32.totalorder %s46, %s49
      %p55 = scmp.eq.s32.totalorder %s15, 0
      %p56 = por %p54, %p55
      %p57 = scmp.ne.s32.totalorder %s46, %s49
      %p58 = scmp.eq.s32.totalorder %s20, 1
      %p59 = por %p57, %p58
      %p60 = scmp.ne.s32.totalorder %s49, %s50
      %p61 = scmp.eq.s32.totalorder %s20, 0
      %p62 = por %p60, %p61
      %p63 = scmp.ne.s32.totalorder %s49, %s50
      %p64 = scmp.eq.s32.totalorder %s21, 1
      %p65 = por %p63, %p64
      %p67 = scmp.ne.s32.totalorder %s50, %s66
      %p68 = scmp.eq.s32.totalorder %s21, 0
      %p69 = por %p67, %p68
      %s70 = ssub.s32 %s15, %s22
      %p71 = scmp.eq.s32.totalorder %s70, 0
      %s73 = sadd.s32 %s72, 1
      %s74 = scalar_select %p71, %s72, %s73
      %p77 = pneg %p71
      %p78 = scmp.eq.s32.totalorder %s15, 1
      %p79 = por %p77, %p78
      %p80 = scmp.ne.s32.totalorder %s72, %s75
      %p81 = scmp.eq.s32.totalorder %s15, 0
      %p82 = por %p80, %p81
      %p83 = scmp.ne.s32.totalorder %s72, %s75
      %p84 = scmp.eq.s32.totalorder %s20, 1
      %p85 = por %p83, %p84
      %p86 = scmp.ne.s32.totalorder %s75, %s76
      %p87 = scmp.eq.s32.totalorder %s20, 0
      %p88 = por %p86, %p87
      %p89 = scmp.ne.s32.totalorder %s75, %s76
      %p90 = scmp.eq.s32.totalorder %s21, 1
      %p91 = por %p89, %p90
      %p93 = scmp.ne.s32.totalorder %s76, %s92
      %p94 = scmp.eq.s32.totalorder %s21, 0
      %p95 = por %p93, %p94
      %p96 = scmp.le.s32.totalorder 1, %s15
      %p97 = scmp.lt.s32.totalorder %s15, 3
      %p98 = pnand %p96, %p97
      %p99 = pneg %p98
      // Predicated region
      $region9: #{tpu_custom_call.1} parent=5 // pred_check
        _
      $region10: #{tpu_custom_call.1} parent=5 // pred_check_branch
        %101 = sbr.rel (%p98) target = $region12
      $region11: #{tpu_custom_call.1} parent=5 // pred_region
        %s102 = ssub.s32 %s15, 1
        // Predicated region
        $region13: #{tpu_custom_call.1} parent=11 // pred_check
          %p103 = pneg %p36
        $region14: #{tpu_custom_call.1} parent=11 // pred_check_branch
          %105 = sbr.rel (%p103) target = $region16
        $region15: #{tpu_custom_call.1} parent=11 // pred_region
          %s107 = ssub.s32 32, 32
          %108 = vsyncadd [#allocation5], %s107
          %111 = dma.hbm_to_smem %s0, 32, [#allocation2], [#allocation5]
        $region16: #{tpu_custom_call.1} parent=11 // pred_fallthru
          _
      $region12: #{tpu_custom_call.1} parent=5 // pred_fallthru
        _
      %p112 = scmp.lt.s32.totalorder %s15, 2
      // Predicated region
      $region17: #{tpu_custom_call.1} parent=5 // pred_check
        %p113 = pneg %p112
      $region18: #{tpu_custom_call.1} parent=5 // pred_check_branch
        %115 = sbr.rel (%p113) target = $region20
      $region19: #{tpu_custom_call.1} parent=5 // pred_region
        // Predicated region
        $region21: #{tpu_custom_call.1} parent=19 // pred_check
          %p116 = pneg %p56
        $region22: #{tpu_custom_call.1} parent=19 // pred_check_branch
          %118 = sbr.rel (%p116) target = $region24
        $region23: #{tpu_custom_call.1} parent=19 // pred_region
          %s119 = sand.u32 %s46, 1
          %s120 = scalar_lea.sflag [#allocation3], %s119
          %s121 = sand.u32 %s46, 1
          %s122 = smul.addr %s121, 8
          %s123 = scalar_lea.vmem [#allocation6], %s122
          %s125 = ssub.s32 128, 128
          %126 = vsyncadd %s120, %s125
          %s127 = smul.addr %s15, 2
          %s128 = smul.addr %s127, 64
          %s129 = scalar_lea.hbm %s1, %s128
          %s131 = sshll.u32 %s123, 4
          %s132 = int_to_ptr.vmem [resolvable:$true] %s131
          %134 = dma.hbm_to_vmem [thread:$0]  %s129, 128, %s132, %s120
        $region24: #{tpu_custom_call.1} parent=19 // pred_fallthru
          _
      $region20: #{tpu_custom_call.1} parent=5 // pred_fallthru
        _
      %p135 = scmp.le.s32.totalorder 1, %s15
      %p136 = scmp.lt.s32.totalorder %s15, 3
      %p137 = pnand %p135, %p136
      %p138 = pneg %p137
      // Predicated region
      $region25: #{tpu_custom_call.1} parent=5 // pred_check
        _
      $region26: #{tpu_custom_call.1} parent=5 // pred_check_branch
        %140 = sbr.rel (%p137) target = $region28
      $region27: #{tpu_custom_call.1} parent=5 // pred_region
        %s141 = ssub.s32 %s15, 1
        // Predicated region
        $region29: #{tpu_custom_call.1} parent=27 // pred_check
          %p142 = pneg %p36
        $region30: #{tpu_custom_call.1} parent=27 // pred_check_branch
          %144 = sbr.rel (%p142) target = $region32
        $region31: #{tpu_custom_call.1} parent=27 // pred_region
          %145 = dma.done [#allocation5], 32
        $region32: #{tpu_custom_call.1} parent=27 // pred_fallthru
          _
        %s146 = sand.u32 %s49, 1
        %s147 = scalar_lea.sflag [#allocation3], %s146
        %s148 = sand.u32 %s49, 1
        %s149 = smul.addr %s148, 8
        %s150 = scalar_lea.vmem [#allocation6], %s149
        // Predicated region
        $region33: #{tpu_custom_call.1} parent=27 // pred_check
          %p151 = pneg %p62
        $region34: #{tpu_custom_call.1} parent=27 // pred_check_branch
          %153 = sbr.rel (%p151) target = $region36
        $region35: #{tpu_custom_call.1} parent=27 // pred_region
          %154 = dma.done %s147, 128
        $region36: #{tpu_custom_call.1} parent=27 // pred_fallthru
          _
        %155 = sfence
        %p156 = pneg %p36
        %p157 = pneg %p33
        %s158 = sand.u32 %s49, 1
        %s159 = scalar_lea.sflag [#allocation3], %s158
        %s160 = sand.u32 %s49, 1
        %s161 = smul.addr %s160, 8
        %s162 = scalar_lea.vmem [#allocation6], %s161
        %p163 = pneg %p62
        %p164 = pneg %p59
        %p165 = pneg %p88
        %p166 = pneg %p85
        %s167 = sand.u32 %s75, 1
        %s168 = scalar_lea.sflag [#allocation4], %s167
        %s169 = sand.u32 %s75, 1
        %s170 = smul.addr %s169, 8
        %s171 = scalar_lea.vmem [#allocation7], %s170
        %v172 = vld [vmem:[%s150] sm:$0xff]
        %v174 = vcombine.high %v172, %v172
        %vm176 = vcmask 1043456
        %v177 = vsel %vm176, %v172, 0.0
        %v178 = vrot.slane %v177, 4
        %v179 = vadd.f32 %v177, %v178
        %v180 = vrot.slane %v179, 2
        %v181 = vadd.f32 %v179, %v180
        %v182 = vrot.slane %v181, 1
        %v183 = vadd.f32 %v181, %v182
        %v184 = vsel %vm176, %v174, 0.0
        %v185 = vrot.slane %v184, 4
        %v186 = vadd.f32 %v184, %v185
        %v187 = vrot.slane %v186, 2
        %v188 = vadd.f32 %v186, %v187
        %v189 = vrot.slane %v188, 1
        %v190 = vadd.f32 %v188, %v189
        %v191 = vmul.f32 %v183, 0.25
        %v192 = vmul.f32 %v190, 0.25
        %v193 = vsel %vm176, %v172, -inf
        %v194 = vrot.slane %v193, 4
        %v195 = vmax.f32 %v193, %v194
        %v196 = vrot.slane %v195, 2
        %v197 = vmax.f32 %v195, %v196
        %v198 = vrot.slane %v197, 1
        %v199 = vmax.f32 %v197, %v198
        %v200 = vsel %vm176, %v174, -inf
        %v201 = vrot.slane %v200, 4
        %v202 = vmax.f32 %v200, %v201
        %v203 = vrot.slane %v202, 2
        %v204 = vmax.f32 %v202, %v203
        %v205 = vrot.slane %v204, 1
        %v206 = vmax.f32 %v204, %v205
        %v207 = vlaneseq
        %v208 = vand.u32 %v207, 127
        %v209 = vadd.s32 %v208, 128
        %s210 = sld [smem:[#allocation2 + $0x3]]
        %v211 = vstv %s210
        %v212 = vmul.f32 %v211, %v191
        %v213 = vmul.f32 %v211, %v192
        %s214 = sld [smem:[#allocation2 + $0x83]]
        %v215 = vstv %s214
        %v216 = vmul.f32 %v215, %v199
        %v217 = vmul.f32 %v215, %v206
        %v218 = vadd.f32 %v212, %v216
        %v219 = vadd.f32 %v213, %v217
        %s220 = sld [smem:[#allocation2]]
        %v221 = vstv %s220
        %v222 = vmul.f32 %v221, %v191
        %v223 = vmul.f32 %v221, %v192
        %s224 = sld [smem:[#allocation2 + $0x80]]
        %v225 = vstv %s224
        %v226 = vmul.f32 %v225, %v199
        %v227 = vmul.f32 %v225, %v206
        %v228 = vadd.f32 %v222, %v226
        %v229 = vadd.f32 %v223, %v227
        %230 = vrot.lane.b32.xlu0 %v228, 48
        %v231 = vpop.permute.xlu0 %230
        %232 = vrot.lane.b32.xlu0 %v229, 48
        %v233 = vpop.permute.xlu0 %232
        %vm234 = vcmp.lt.s32.totalorder %v208, 48
        %v235 = vsel %vm234, %v231, %v233
        %v236 = vsel %vm234, %v233, %v231
        %v237 = vadd.s32 %v208, 4294967248
        %v238 = vadd.s32 %v209, 4294967248
        %vm239 = vcmp.ge.s32.totalorder %v237, 0
        %vm240 = vcmp.ge.s32.totalorder %v238, 0
        %vm241 = vcmp.lt.s32.totalorder %v237, 256
        %vm242 = vcmp.lt.s32.totalorder %v238, 256
        %vm243 = vmand %vm239, %vm241
        %vm244 = vmand %vm240, %vm242
        %v245 = vsel %vm243, %v236, 0.0
        %v246 = vsel %vm244, %v235, 0.0
        %v247 = vadd.f32 %v218, %v245
        %v248 = vadd.f32 %v219, %v246
        %s249 = sld [smem:[#allocation2 + $0x1]]
        %v250 = vstv %s249
        %v251 = vmul.f32 %v250, %v191
        %v252 = vmul.f32 %v250, %v192
        %s253 = sld [smem:[#allocation2 + $0x81]]
        %v254 = vstv %s253
        %v255 = vmul.f32 %v254, %v199
        %v256 = vmul.f32 %v254, %v206
        %v257 = vadd.f32 %v251, %v255
        %v258 = vadd.f32 %v252, %v256
        %259 = vrot.lane.b32.xlu0 %v257, 32
        %v260 = vpop.permute.xlu0 %259
        %261 = vrot.lane.b32.xlu0 %v258, 32
        %v262 = vpop.permute.xlu0 %261
        %vm263 = vcmp.lt.s32.totalorder %v208, 32
        %v264 = vsel %vm263, %v260, %v262
        %v265 = vsel %vm263, %v262, %v260
        %v266 = vadd.s32 %v208, 4294967264
        %v267 = vadd.s32 %v209, 4294967264
        %vm268 = vcmp.ge.s32.totalorder %v266, 0
        %vm269 = vcmp.ge.s32.totalorder %v267, 0
        %vm270 = vcmp.lt.s32.totalorder %v266, 256
        %vm271 = vcmp.lt.s32.totalorder %v267, 256
        %vm272 = vmand %vm268, %vm270
        %vm273 = vmand %vm269, %vm271
        %v274 = vsel %vm272, %v265, 0.0
        %v275 = vsel %vm273, %v264, 0.0
        %v276 = vadd.f32 %v247, %v274
        %v277 = vadd.f32 %v248, %v275
        %s278 = sld [smem:[#allocation2 + $0x2]]
        %v279 = vstv %s278
        %v280 = vmul.f32 %v279, %v191
        %v281 = vmul.f32 %v279, %v192
        %s282 = sld [smem:[#allocation2 + $0x82]]
        %v283 = vstv %s282
        %v284 = vmul.f32 %v283, %v199
        %v285 = vmul.f32 %v283, %v206
        %v286 = vadd.f32 %v280, %v284
        %v287 = vadd.f32 %v281, %v285
        %288 = vrot.lane.b32.xlu0 %v286, 16
        %v289 = vpop.permute.xlu0 %288
        %290 = vrot.lane.b32.xlu0 %v287, 16
        %v291 = vpop.permute.xlu0 %290
        %vm292 = vcmp.lt.s32.totalorder %v208, 16
        %v293 = vsel %vm292, %v289, %v291
        %v294 = vsel %vm292, %v291, %v289
        %v295 = vadd.s32 %v208, 4294967280
        %v296 = vadd.s32 %v209, 4294967280
        %vm297 = vcmp.ge.s32.totalorder %v295, 0
        %vm298 = vcmp.ge.s32.totalorder %v296, 0
        %vm299 = vcmp.lt.s32.totalorder %v295, 256
        %vm300 = vcmp.lt.s32.totalorder %v296, 256
        %vm301 = vmand %vm297, %vm299
        %vm302 = vmand %vm298, %vm300
        %v303 = vsel %vm301, %v294, 0.0
        %v304 = vsel %vm302, %v293, 0.0
        %v305 = vadd.f32 %v276, %v303
        %v306 = vadd.f32 %v277, %v304
        %s307 = sld [smem:[#allocation2 + $0x4]]
        %v308 = vstv %s307
        %v309 = vmul.f32 %v308, %v191
        %v310 = vmul.f32 %v308, %v192
        %s311 = sld [smem:[#allocation2 + $0x84]]
        %v312 = vstv %s311
        %v313 = vmul.f32 %v312, %v199
        %v314 = vmul.f32 %v312, %v206
        %v315 = vadd.f32 %v309, %v313
        %v316 = vadd.f32 %v310, %v314
        %317 = vrot.lane.b32.xlu0 %v315, 112
        %v318 = vpop.permute.xlu0 %317
        %319 = vrot.lane.b32.xlu0 %v316, 112
        %v320 = vpop.permute.xlu0 %319
        %vm321 = vcmp.lt.s32.totalorder %v208, 112
        %v322 = vsel %vm321, %v318, %v320
        %v323 = vsel %vm321, %v320, %v318
        %v324 = vadd.s32 %v208, 16
        %v325 = vadd.s32 %v209, 16
        %vm326 = vcmp.ge.s32.totalorder %v324, 0
        %vm327 = vcmp.ge.s32.totalorder %v325, 0
        %vm328 = vcmp.lt.s32.totalorder %v324, 256
        %vm329 = vcmp.lt.s32.totalorder %v325, 256
        %vm330 = vmand %vm326, %vm328
        %vm331 = vmand %vm327, %vm329
        %v332 = vsel %vm330, %v322, 0.0
        %v333 = vsel %vm331, %v323, 0.0
        %v334 = vadd.f32 %v305, %v332
        %v335 = vadd.f32 %v306, %v333
        %s336 = sld [smem:[#allocation2 + $0x5]]
        %v337 = vstv %s336
        %v338 = vmul.f32 %v337, %v191
        %v339 = vmul.f32 %v337, %v192
        %s340 = sld [smem:[#allocation2 + $0x85]]
        %v341 = vstv %s340
        %v342 = vmul.f32 %v341, %v199
        %v343 = vmul.f32 %v341, %v206
        %v344 = vadd.f32 %v338, %v342
        %v345 = vadd.f32 %v339, %v343
        %346 = vrot.lane.b32.xlu0 %v344, 96
        %v347 = vpop.permute.xlu0 %346
        %348 = vrot.lane.b32.xlu0 %v345, 96
        %v349 = vpop.permute.xlu0 %348
        %vm350 = vcmp.lt.s32.totalorder %v208, 96
        %v351 = vsel %vm350, %v347, %v349
        %v352 = vsel %vm350, %v349, %v347
        %v353 = vadd.s32 %v208, 32
        %v354 = vadd.s32 %v209, 32
        %vm355 = vcmp.ge.s32.totalorder %v353, 0
        %vm356 = vcmp.ge.s32.totalorder %v354, 0
        %vm357 = vcmp.lt.s32.totalorder %v353, 256
        %vm358 = vcmp.lt.s32.totalorder %v354, 256
        %vm359 = vmand %vm355, %vm357
        %vm360 = vmand %vm356, %vm358
        %v361 = vsel %vm359, %v351, 0.0
        %v362 = vsel %vm360, %v352, 0.0
        %v363 = vadd.f32 %v334, %v361
        %v364 = vadd.f32 %v335, %v362
        %s365 = sld [smem:[#allocation2 + $0x6]]
        %v366 = vstv %s365
        %v367 = vmul.f32 %v366, %v191
        %v368 = vmul.f32 %v366, %v192
        %s369 = sld [smem:[#allocation2 + $0x86]]
        %v370 = vstv %s369
        %v371 = vmul.f32 %v370, %v199
        %v372 = vmul.f32 %v370, %v206
        %v373 = vadd.f32 %v367, %v371
        %v374 = vadd.f32 %v368, %v372
        %375 = vrot.lane.b32.xlu0 %v373, 80
        %v376 = vpop.permute.xlu0 %375
        %377 = vrot.lane.b32.xlu0 %v374, 80
        %v378 = vpop.permute.xlu0 %377
        %vm379 = vcmp.lt.s32.totalorder %v208, 80
        %v380 = vsel %vm379, %v376, %v378
        %v381 = vsel %vm379, %v378, %v376
        %v382 = vadd.s32 %v208, 48
        %v383 = vadd.s32 %v209, 48
        %vm384 = vcmp.ge.s32.totalorder %v382, 0
        %vm385 = vcmp.ge.s32.totalorder %v383, 0
        %vm386 = vcmp.lt.s32.totalorder %v382, 256
        %vm387 = vcmp.lt.s32.totalorder %v383, 256
        %vm388 = vmand %vm384, %vm386
        %vm389 = vmand %vm385, %vm387
        %v390 = vsel %vm388, %v380, 0.0
        %v391 = vsel %vm389, %v381, 0.0
        %v392 = vadd.f32 %v363, %v390
        %v393 = vadd.f32 %v364, %v391
        %v394 = vxor.u32 %v392, 2147483648
        %v395 = vxor.u32 %v393, 2147483648
        %v396 = vmul.f32 %v394, 1.442695
        %v397 = vpow.pop %v396
        %v398 = vmul.f32 %v395, 1.442695
        %v399 = vpow.pop %v398
        %v400 = vadd.f32 %v397, 1.0
        %v401 = vadd.f32 %v399, 1.0
        %v402 = vrcp.pop %v400
        %v403 = vmul.f32 1.0, %v402
        %v404 = vrcp.pop %v401
        %v405 = vmul.f32 1.0, %v404
        %v406 = vlaneseq
        %v407 = vshrl.u32 %v406, 7
        %v408 = vsub.s32 0, %v407
        %v409 = vrot.slane %v403, %v408
        %v410 = vlaneseq
        %v411 = vshrl.u32 %v410, 7
        %v412 = vsub.s32 0, %v411
        %v413 = vrot.slane %v405, %v412
        %v416 = vcombine.low %v409, %v413
        %v418 = vmul.f32 %v172, %v416
        %419 = vst [vmem:[%s171] sm:$0xff] %v418
        %s420 = sand.u32 %s75, 1
        %s421 = scalar_lea.sflag [#allocation4], %s420
        %s422 = sand.u32 %s75, 1
        %s423 = smul.addr %s422, 8
        %s424 = scalar_lea.vmem [#allocation7], %s423
        // Predicated region
        $region37: #{tpu_custom_call.1} parent=27 // pred_check
          %p425 = pneg %p85
        $region38: #{tpu_custom_call.1} parent=27 // pred_check_branch
          %427 = sbr.rel (%p425) target = $region40
        $region39: #{tpu_custom_call.1} parent=27 // pred_region
          %s429 = ssub.s32 128, 128
          %430 = vsyncadd %s421, %s429
          %s431 = smul.addr %s20, 2
          %s432 = smul.addr %s431, 64
          %s433 = scalar_lea.hbm %s2, %s432
          %s435 = sshll.u32 %s424, 4
          %s436 = int_to_ptr.vmem [resolvable:$true] %s435
          %438 = dma.vmem_to_hbm [thread:$0]  %s436, 128, %s433, %s421
        $region40: #{tpu_custom_call.1} parent=27 // pred_fallthru
          _
      $region28: #{tpu_custom_call.1} parent=5 // pred_fallthru
        _
      %p439 = scmp.le.s32.totalorder 2, %s15
      // Predicated region
      $region41: #{tpu_custom_call.1} parent=5 // pred_check
        %p440 = pneg %p439
      $region42: #{tpu_custom_call.1} parent=5 // pred_check_branch
        %442 = sbr.rel (%p440) target = $region44
      $region43: #{tpu_custom_call.1} parent=5 // pred_region
        %s443 = ssub.s32 %s15, 2
        // Predicated region
        $region45: #{tpu_custom_call.1} parent=43 // pred_check
          %p444 = pneg %p91
        $region46: #{tpu_custom_call.1} parent=43 // pred_check_branch
          %446 = sbr.rel (%p444) target = $region48
        $region47: #{tpu_custom_call.1} parent=43 // pred_region
          %s447 = sand.u32 %s76, 1
          %s448 = scalar_lea.sflag [#allocation4], %s447
          %s449 = sand.u32 %s76, 1
          %s450 = smul.addr %s449, 8
          %s451 = scalar_lea.vmem [#allocation7], %s450
          %452 = dma.done %s448, 128
        $region48: #{tpu_custom_call.1} parent=43 // pred_fallthru
          _
      $region44: #{tpu_custom_call.1} parent=5 // pred_fallthru
        _
    $region6: #{tpu_custom_call.1} parent=1 // loop_footer
      %s19 = sadd.s32 1, %s15
    $region7: #{tpu_custom_call.1} parent=1 // loop_footer_branch
      %14 = sbr.rel target = $region3
    $region8: #{tpu_custom_call.1} parent=1 // loop_exit
      _
    %453 = vsyncpa [#allocation3], 1
    %s454 = scalar_lea.sflag [#allocation3], 1
    %455 = vsyncpa %s454, 1
    %456 = vsyncpa [#allocation4], 1
    %s457 = scalar_lea.sflag [#allocation4], 1
    %458 = vsyncpa %s457, 1
    %459 = vsyncpa [#allocation5], 1
    %s460 = scalar_lea.sflag [#allocation5], 1
    %461 = vsyncpa %s460, 1

</llo_original>
